<compile_context>
chip_gen: v7x
topology: tpu7x:2x2x1
jax: 0.10.0
libtpu: 0.0.40
codegen_flags: <defaults>
</compile_context>

<pallas_src>
import functools

import jax
import jax.numpy as jnp
from jax.experimental import pallas as pl
from jax.experimental.pallas import tpu as pltpu

DROPOUT_P = 0.8
SCALE_FACTOR = 2.0 ** 0.5


def _attn_dropout_kernel(q_ref, kv_ref, mask_ref, o_ref, *, scale_factor, dropout_p):
    # Block shapes: q [b, S, D], kv [b, 2S, D], mask [b, S, S], out [b, S, S]
    # (b is either the full batch or 1, depending on the grid layout).
    s = q_ref.shape[1]

    # Single fused MXU contraction over D for both (query@key^T) and
    # (query@value^T): bf16 operands, f32 accumulation.
    q = q_ref[...].astype(jnp.bfloat16)
    kv = kv_ref[...].astype(jnp.bfloat16)
    fused = jnp.einsum("bqd,bkd->bqk", q, kv,
                       preferred_element_type=jnp.float32)      # [b, S, 2S]
    scores = fused[:, :, :s]                                    # query @ key^T
    vproj = fused[:, :, s:]                                     # query @ value^T

    # Scaled softmax along the last dim (all f32 elementwise).
    scaled = scores * (1.0 / scale_factor)
    m = jnp.max(scaled, axis=-1, keepdims=True)
    e = jnp.exp(scaled - m)
    inv_denom = pl.reciprocal(jnp.sum(e, axis=-1, keepdims=True), approx=True)
    sm = e * inv_denom

    # Inverted dropout: zero w.p. p, survivors scaled by 1/(1-p).
    keep = mask_ref[...] != 0
    dropped = jnp.where(keep, sm * (1.0 / (1.0 - dropout_p)), 0.0)

    # output = dropout(softmax) @ vproj  (bf16 operands, f32 accumulation).
    out = jnp.einsum("bqk,bkn->bqn",
                     dropped.astype(jnp.bfloat16),
                     vproj.astype(jnp.bfloat16),
                     preferred_element_type=jnp.float32)
    o_ref[...] = out.astype(o_ref.dtype)


def _tensorcores_per_chip():
    # Best-effort generation gate: v7x has 2 TensorCores per chip; v5e/v6e have 1.
    try:
        kind = jax.devices()[0].device_kind.lower()
    except Exception:
        return 1
    return 2 if "v7" in kind else 1


def attn_dropout(query, key, value, *, dropout_key,
                 scale_factor=SCALE_FACTOR, dropout_p=DROPOUT_P):
    B, S, D = query.shape
    assert key.shape == (B, S, D) and value.shape == (B, S, D)

    # Fuse key/value along the sequence axis so the kernel needs one MXU
    # contraction instead of two for the first stage.
    kv = jnp.concatenate([key, value], axis=1)                  # [B, 2S, D]

    # Deterministic dropout keep-mask, generated outside the kernel (no
    # TPU-only stateful PRNG dependency) and shipped as uint8 (4x narrower
    # than f32 uniforms).
    u = jax.random.uniform(dropout_key, (B, S, S), dtype=jnp.float32)
    keep_mask = (u >= dropout_p).astype(jnp.uint8)

    kernel = functools.partial(_attn_dropout_kernel,
                               scale_factor=scale_factor,
                               dropout_p=dropout_p)

    cost = pl.CostEstimate(
        flops=B * (2 * S * (2 * S) * D + 2 * S * S * S),
        transcendentals=B * S * S,
        bytes_accessed=(B * S * D + B * 2 * S * D + B * S * S) * 4 + B * S * S,
    )
    out_shape = jax.ShapeDtypeStruct((B, S, S), query.dtype)

    if _tensorcores_per_chip() >= 2 and B > 1:
        # v7x: split the batch across the two TensorCores (parallel grid axis).
        return pl.pallas_call(
            kernel,
            out_shape=out_shape,
            grid=(B,),
            in_specs=[
                pl.BlockSpec((1, S, D), lambda b: (b, 0, 0)),
                pl.BlockSpec((1, 2 * S, D), lambda b: (b, 0, 0)),
                pl.BlockSpec((1, S, S), lambda b: (b, 0, 0)),
            ],
            out_specs=pl.BlockSpec((1, S, S), lambda b: (b, 0, 0)),
            compiler_params=pltpu.CompilerParams(
                dimension_semantics=("parallel",)),
            cost_estimate=cost,
        )(query, kv, keep_mask)

    # v5e / v6e (single TensorCore): one gridless invocation, whole arrays
    # pinned in VMEM (tiny problem -> no pipelining / per-step overhead).
    return pl.pallas_call(
        kernel,
        out_shape=out_shape,
        in_specs=[pl.BlockSpec(memory_space=pltpu.MemorySpace.VMEM)] * 3,
        out_specs=pl.BlockSpec(memory_space=pltpu.MemorySpace.VMEM),
        cost_estimate=cost,
    )(query, kv, keep_mask)


if __name__ == "__main__":
    # Shapes consistent with the module's forward: B=2, S=8, D=32
    B, S, D = 2, 8, 32
    key0 = jax.random.PRNGKey(0)
    kq, kk, kval, kd = jax.random.split(key0, 4)
    query = jax.random.normal(kq, (B, S, D), dtype=jnp.float32)
    key_t = jax.random.normal(kk, (B, S, D), dtype=jnp.float32)
    value = jax.random.normal(kval, (B, S, D), dtype=jnp.float32)

    out = attn_dropout(query, key_t, value, dropout_key=kd)
    jax.block_until_ready(out)
    assert out.shape == (B, S, S)
    print("KERNEL_OK")
</pallas_src>

<mosaic_0001>
module attributes {stable_mosaic.version = 11 : i64} {
  func.func @_attn_dropout_kernel(%arg0: memref<2x8x32xf32, #tpu.memory_space<vmem>>, %arg1: memref<2x16x32xf32, #tpu.memory_space<vmem>>, %arg2: memref<2x8x8xi8, #tpu.memory_space<vmem>>, %arg3: memref<2x8x8xf32, #tpu.memory_space<vmem>>) attributes {dimension_semantics = [], scalar_prefetch = 0 : i64, scratch_operands = 0 : i64, tpu.core_type = #tpu.core_type<tc>} {
    %c0 = arith.constant 0 : index
    %c0_0 = arith.constant 0 : index
    %c0_1 = arith.constant 0 : index
    %0 = vector.load %arg0[%c0, %c0_0, %c0_1] : memref<2x8x32xf32, #tpu.memory_space<vmem>>, vector<2x8x32xf32>
    %1 = arith.truncf %0 : vector<2x8x32xf32> to vector<2x8x32xbf16>
    %c0_2 = arith.constant 0 : index
    %c0_3 = arith.constant 0 : index
    %c0_4 = arith.constant 0 : index
    %2 = vector.load %arg1[%c0_2, %c0_3, %c0_4] : memref<2x16x32xf32, #tpu.memory_space<vmem>>, vector<2x16x32xf32>
    %3 = arith.truncf %2 : vector<2x16x32xf32> to vector<2x16x32xbf16>
    "tpu.trace_start"() <{level = 10 : i32, message = "bqd,bkd->bqk"}> : () -> ()
    %cst = arith.constant dense<0.000000e+00> : vector<2x8x16xf32>
    %4 = tpu.matmul %1, %3, %cst {dimension_numbers = #tpu.dot_dimension_numbers<[2], [2], [1], [1], [0, 0, 0, 1, 1, 1], [0], [0]>} : vector<2x8x32xbf16>, vector<2x16x32xbf16>, vector<2x8x16xf32> -> vector<2x8x16xf32>
    "tpu.trace_stop"() : () -> ()
    %5 = vector.extract_strided_slice %4 {offsets = [0, 0, 0], sizes = [2, 8, 8], strides = [1, 1, 1]} : vector<2x8x16xf32> to vector<2x8x8xf32>
    %6 = vector.extract_strided_slice %4 {offsets = [0, 0, 8], sizes = [2, 8, 8], strides = [1, 1, 1]} : vector<2x8x16xf32> to vector<2x8x8xf32>
    %cst_5 = arith.constant 0.707106769 : f32
    %7 = vector.broadcast %cst_5 : f32 to vector<2x8x8xf32>
    %8 = arith.mulf %5, %7 : vector<2x8x8xf32>
    %cst_6 = arith.constant dense<0xFF800000> : vector<2x8xf32>
    %9 = vector.multi_reduction <maximumf>, %8, %cst_6 [2] : vector<2x8x8xf32> to vector<2x8xf32>
    %10 = vector.shape_cast %9 : vector<2x8xf32> to vector<2x8x1xf32>
    %11 = vector.broadcast %10 : vector<2x8x1xf32> to vector<2x8x8xf32>
    %12 = arith.subf %8, %11 : vector<2x8x8xf32>
    %13 = math.exp %12 : vector<2x8x8xf32>
    %cst_7 = arith.constant dense<0.000000e+00> : vector<2x8xf32>
    %14 = vector.multi_reduction <add>, %13, %cst_7 [2] : vector<2x8x8xf32> to vector<2x8xf32>
    %15 = vector.shape_cast %14 : vector<2x8xf32> to vector<2x8x1xf32>
    %16 = tpu.reciprocal %15 {approx = true} : vector<2x8x1xf32> -> vector<2x8x1xf32>
    %17 = vector.broadcast %16 : vector<2x8x1xf32> to vector<2x8x8xf32>
    %18 = arith.mulf %13, %17 : vector<2x8x8xf32>
    %c0_8 = arith.constant 0 : index
    %c0_9 = arith.constant 0 : index
    %c0_10 = arith.constant 0 : index
    %19 = vector.load %arg2[%c0_8, %c0_9, %c0_10] : memref<2x8x8xi8, #tpu.memory_space<vmem>>, vector<2x8x8xi8>
    %c0_i8 = arith.constant 0 : i8
    %20 = vector.broadcast %c0_i8 : i8 to vector<2x8x8xi8>
    %21 = arith.cmpi ne, %19, %20 : vector<2x8x8xi8>
    %cst_11 = arith.constant 5.000000e+00 : f32
    %22 = vector.broadcast %cst_11 : f32 to vector<2x8x8xf32>
    %23 = arith.mulf %18, %22 : vector<2x8x8xf32>
    %cst_12 = arith.constant 0.000000e+00 : f32
    %24 = vector.broadcast %cst_12 : f32 to vector<2x8x8xf32>
    %25 = arith.select %21, %23, %24 : vector<2x8x8xi1>, vector<2x8x8xf32>
    %26 = arith.truncf %25 : vector<2x8x8xf32> to vector<2x8x8xbf16>
    %27 = arith.truncf %6 : vector<2x8x8xf32> to vector<2x8x8xbf16>
    "tpu.trace_start"() <{level = 10 : i32, message = "bqk,bkn->bqn"}> : () -> ()
    %cst_13 = arith.constant dense<0.000000e+00> : vector<2x8x8xf32>
    %28 = tpu.matmul %26, %27, %cst_13 {dimension_numbers = #tpu.dot_dimension_numbers<[2], [1], [1], [2], [0, 0, 0, 1, 1, 2], [0], [0]>} : vector<2x8x8xbf16>, vector<2x8x8xbf16>, vector<2x8x8xf32> -> vector<2x8x8xf32>
    "tpu.trace_stop"() : () -> ()
    %c0_14 = arith.constant 0 : index
    %c0_15 = arith.constant 0 : index
    %c0_16 = arith.constant 0 : index
    %29 = vector.load %arg3[%c0_14, %c0_15, %c0_16] : memref<2x8x8xf32, #tpu.memory_space<vmem>>, vector<2x8x8xf32>
    tpu.vector_store %arg3[%c0_14, %c0_15, %c0_16], %28 {strides = array<i32>} : memref<2x8x8xf32, #tpu.memory_space<vmem>>, vector<2x8x8xf32>,
    return
  }
}

</mosaic_0001>

<llo_original>
// kernel: tpu_custom_call.1
$region0: #{tpu_custom_call.1}
  #allocation0 [shape = 'u32[]', space=smem, size = 0x4, offset = 0x4, fixed_abs, tag = 'smem constant byte address 0x4 - core index']
  #allocation1 [shape = 'u32[144,128]{1,0:T(1,128)}', space=vmem, size = 0x12000, scoped, tag = 'internal scratch']
  %s0 = inlined_call_operand.hbm [shape: f32[2,8,32], index: 0, kind: input, shape index: {}]
  %s1 = inlined_call_operand.hbm [shape: f32[2,16,32], index: 1, kind: input, shape index: {}]
  %s2 = inlined_call_operand.vmem [shape: u8[2,8,8], index: 2, kind: input, shape index: {}]
  %s3 = inlined_call_operand.hbm [shape: f32[2,8,8], index: 3, kind: output, shape index: {}]
  %s4 = sld [smem:[#allocation0]]
  $region30: #{tpu_custom_call.1} parent=0
    _
  %s6 = ssub.s32 1, %s4
  %s7 = scalar_select 0, %s6, %s4
  $region1: #{tpu_custom_call.1} parent=0
    #allocation2 [shape = 'u8[8192]{0}', space=vmem, size = 0x2000, scoped, tag = 'input window, operand 0, single buffered']
    #allocation3 [shape = 's32[1]{0}', space=sflag, size = 0x4, scoped, tag = 'scoped memory for tpu_custom_call.1']
    #allocation4 [shape = 's32[1]{0}', space=sflag, size = 0x4, scoped, tag = 'scoped memory for tpu_custom_call.1']
    #allocation5 [shape = 'u8[16384]{0}', space=vmem, size = 0x4000, scoped, tag = 'input window, operand 1, single buffered']
    #allocation6 [shape = 's32[1]{0}', space=sflag, size = 0x4, scoped, tag = 'scoped memory for tpu_custom_call.1']
    #allocation7 [shape = 'u8[8192]{0}', space=vmem, size = 0x2000, scoped, tag = 'output window, operand 0, single buffered']
    %8 = vsyncpa [#allocation3], 0
    %9 = vsyncpa [#allocation6], 0
    %10 = vsyncpa [#allocation4], 0
    // Predicated region
    $region2: #{tpu_custom_call.1} parent=1 // pred_check
      _
    $region3: #{tpu_custom_call.1} parent=1 // pred_check_branch
      %12 = sbr.rel (0) target = $region5
    $region4: #{tpu_custom_call.1} parent=1 // pred_region
      %s14 = ssub.s32 256, 256
      %15 = vsyncadd [#allocation3], %s14
      %s16 = sshll.u32 [#allocation2], 4
      %s17 = int_to_ptr.vmem [resolvable:$true] %s16
      %22 = dma.hbm_to_vmem [thread:$0]  %s0, 256, %s17, [#allocation3], 128, 128, 8
    $region5: #{tpu_custom_call.1} parent=1 // pred_fallthru
      _
    // Predicated region
    $region6: #{tpu_custom_call.1} parent=1 // pred_check
      _
    $region7: #{tpu_custom_call.1} parent=1 // pred_check_branch
      %24 = sbr.rel (0) target = $region9
    $region8: #{tpu_custom_call.1} parent=1 // pred_region
      %s26 = ssub.s32 512, 512
      %27 = vsyncadd [#allocation6], %s26
      %s28 = sshll.u32 [#allocation5], 4
      %s29 = int_to_ptr.vmem [resolvable:$true] %s28
      %34 = dma.hbm_to_vmem [thread:$0]  %s1, 512, %s29, [#allocation6], 128, 128, 8
    $region9: #{tpu_custom_call.1} parent=1 // pred_fallthru
      _
    // Predicated region
    $region10: #{tpu_custom_call.1} parent=1 // pred_check
      _
    $region11: #{tpu_custom_call.1} parent=1 // pred_check_branch
      %36 = sbr.rel (0) target = $region13
    $region12: #{tpu_custom_call.1} parent=1 // pred_region
      _
    $region13: #{tpu_custom_call.1} parent=1 // pred_fallthru
      _
    // Predicated region
    $region14: #{tpu_custom_call.1} parent=1 // pred_check
      _
    $region15: #{tpu_custom_call.1} parent=1 // pred_check_branch
      %38 = sbr.rel (0) target = $region17
    $region16: #{tpu_custom_call.1} parent=1 // pred_region
      %39 = dma.done [#allocation3], 256
    $region17: #{tpu_custom_call.1} parent=1 // pred_fallthru
      _
    // Predicated region
    $region18: #{tpu_custom_call.1} parent=1 // pred_check
      _
    $region19: #{tpu_custom_call.1} parent=1 // pred_check_branch
      %41 = sbr.rel (0) target = $region21
    $region20: #{tpu_custom_call.1} parent=1 // pred_region
      %42 = dma.done [#allocation6], 512
    $region21: #{tpu_custom_call.1} parent=1 // pred_fallthru
      _
    %v46 = vld [vmem:[#allocation2] sm:$0xff]
    %v47 = vld [vmem:[#allocation2 + $0x8] sm:$0xff]
    %v48 = vpack.c.bf16 %v46, %v46
    %v49 = vpack.c.bf16 %v47, %v47
    %v50 = vld [vmem:[#allocation5] sm:$0xff]
    %v51 = vld [vmem:[#allocation5 + $0x8] sm:$0xff]
    %v52 = vld [vmem:[#allocation5 + $0x10] sm:$0xff]
    %v53 = vld [vmem:[#allocation5 + $0x18] sm:$0xff]
    %v54 = vpack.c.bf16 %v51, %v50
    %v55 = vpack.c.bf16 %v53, %v52
    %vm56 = vcmask 261120
    %v58 = vsel %vm56, %v48, 0
    %v61 = vsel %vm56, %v54, 0
    %63 = vmatprep.subr.bf16.mxu0 0
    %64 = vmatpush1.bf16.xpose.msra.mxu0 %v61
    %65 = vmatprep.subr.bf16.mxu0 0
    %66 = vmatpush1.bf16.xpose.msra.mxu0 0
    %67 = vmatprep.subr.bf16.mxu0 0
    %68 = vmatpush1.bf16.xpose.msra.mxu0 0
    %69 = vmatprep.subr.bf16.mxu0 0
    %70 = vmatpush1.bf16.xpose.msra.mxu0 0
    %71 = vmatprep.subr.bf16.mxu0 0
    %72 = vmatpush1.bf16.xpose.msra.mxu0 0
    %73 = vmatprep.subr.bf16.mxu0 0
    %74 = vmatpush1.bf16.xpose.msra.mxu0 0
    %75 = vmatprep.subr.bf16.mxu0 0
    %76 = vmatpush1.bf16.xpose.msra.mxu0 0
    %77 = vmatprep.subr.bf16.mxu0 0
    %78 = vmatpush1.bf16.xpose.msra.mxu0 0
    %79 = vmatprep.subr.bf16.mxu0 0
    %80 = vmatpush1.bf16.xpose.msra.mxu0 0
    %81 = vmatprep.subr.bf16.mxu0 0
    %82 = vmatpush1.bf16.xpose.msra.mxu0 0
    %83 = vmatprep.subr.bf16.mxu0 0
    %84 = vmatpush1.bf16.xpose.msra.mxu0 0
    %85 = vmatprep.subr.bf16.mxu0 0
    %86 = vmatpush1.bf16.xpose.msra.mxu0 0
    %87 = vmatprep.subr.bf16.mxu0 0
    %88 = vmatpush1.bf16.xpose.msra.mxu0 0
    %89 = vmatprep.subr.bf16.mxu0 0
    %90 = vmatpush1.bf16.xpose.msra.mxu0 0
    %91 = vmatprep.subr.bf16.mxu0 0
    %92 = vmatpush1.bf16.xpose.msra.mxu0 0
    %93 = vmatprep.subr.bf16.mxu0 0
    %94 = vmatpush1.bf16.xpose.msra.mxu0 0
    %95 = vmatprep.mubr.bf16.mxu0 0
    %96 = vmatmul.mubr.bf16.gmra.mrb[0].mxu0 %v58
    %v97 = vpop.f32.mrb[0].mxu0
    %v98 = vadd.f32 0.0, %v97
    %v99 = vpop.f32.mrb[0].mxu0
    %v100 = vpop.f32.mrb[0].mxu0
    %v101 = vpop.f32.mrb[0].mxu0
    %102 = vdwg.mxu0
    %v104 = vsel %vm56, %v49, 0
    %v107 = vsel %vm56, %v55, 0
    %109 = vmatprep.subr.bf16.mxu0 0
    %110 = vmatpush1.bf16.xpose.msra.mxu0 %v107
    %111 = vmatprep.subr.bf16.mxu0 0
    %112 = vmatpush1.bf16.xpose.msra.mxu0 0
    %113 = vmatprep.subr.bf16.mxu0 0
    %114 = vmatpush1.bf16.xpose.msra.mxu0 0
    %115 = vmatprep.subr.bf16.mxu0 0
    %116 = vmatpush1.bf16.xpose.msra.mxu0 0
    %117 = vmatprep.subr.bf16.mxu0 0
    %118 = vmatpush1.bf16.xpose.msra.mxu0 0
    %119 = vmatprep.subr.bf16.mxu0 0
    %120 = vmatpush1.bf16.xpose.msra.mxu0 0
    %121 = vmatprep.subr.bf16.mxu0 0
    %122 = vmatpush1.bf16.xpose.msra.mxu0 0
    %123 = vmatprep.subr.bf16.mxu0 0
    %124 = vmatpush1.bf16.xpose.msra.mxu0 0
    %125 = vmatprep.subr.bf16.mxu0 0
    %126 = vmatpush1.bf16.xpose.msra.mxu0 0
    %127 = vmatprep.subr.bf16.mxu0 0
    %128 = vmatpush1.bf16.xpose.msra.mxu0 0
    %129 = vmatprep.subr.bf16.mxu0 0
    %130 = vmatpush1.bf16.xpose.msra.mxu0 0
    %131 = vmatprep.subr.bf16.mxu0 0
    %132 = vmatpush1.bf16.xpose.msra.mxu0 0
    %133 = vmatprep.subr.bf16.mxu0 0
    %134 = vmatpush1.bf16.xpose.msra.mxu0 0
    %135 = vmatprep.subr.bf16.mxu0 0
    %136 = vmatpush1.bf16.xpose.msra.mxu0 0
    %137 = vmatprep.subr.bf16.mxu0 0
    %138 = vmatpush1.bf16.xpose.msra.mxu0 0
    %139 = vmatprep.subr.bf16.mxu0 0
    %140 = vmatpush1.bf16.xpose.msra.mxu0 0
    %141 = vmatprep.mubr.bf16.mxu0 0
    %142 = vmatmul.mubr.bf16.gmra.mrb[0].mxu0 %v104
    %v143 = vpop.f32.mrb[0].mxu0
    %v144 = vadd.f32 0.0, %v143
    %v145 = vpop.f32.mrb[0].mxu0
    %v146 = vpop.f32.mrb[0].mxu0
    %v147 = vpop.f32.mrb[0].mxu0
    %148 = vdwg.mxu0
    %v149 = vmul.f32 %v98, 0.70710677
    %v150 = vmul.f32 %v144, 0.70710677
    %vm151 = vcmask 64512
    %v152 = vsel %vm151, %v149, -inf
    %153 = vmax.xlane.f32.xlu0 %v152
    %v154 = vpop.xlane.xlu0 %153
    %v155 = vsel %vm151, %v150, -inf
    %156 = vmax.xlane.f32.xlu0 %v155
    %v157 = vpop.xlane.xlu0 %156
    %v158 = vsub.f32 %v149, %v154
    %v159 = vsub.f32 %v150, %v157
    %v160 = vmul.f32 %v158, 1.442695
    %v161 = vpow.pop %v160
    %v162 = vmul.f32 %v159, 1.442695
    %v163 = vpow.pop %v162
    %v164 = vsel %vm151, %v161, 0.0
    %165 = vadd.xlane.f32.xlu0 %v164
    %v166 = vpop.xlane.xlu0 %165
    %v167 = vsel %vm151, %v163, 0.0
    %168 = vadd.xlane.f32.xlu0 %v167
    %v169 = vpop.xlane.xlu0 %168
    %v170 = vrcp.pop %v166
    %v171 = vrcp.pop %v169
    %v172 = vmul.f32 %v161, %v170
    %v173 = vmul.f32 %v163, %v171
    %v174 = vld [vmem:[%s2] sm:$0x3]
    %v175 = vld [vmem:[%s2 + $0x2] sm:$0x3]
    %vm176 = vnez %v174
    %vm177 = vnez %v175
    %v178 = vmul.f32 %v172, 5.0
    %v179 = vmul.f32 %v173, 5.0
    %v180 = vsel %vm176, 16843009, 0
    %v181 = vsel %vm177, 16843009, 0
    %v182 = vunpack.c.0.s8 %v180
    %v183 = vunpack.c.0.s8 %v181
    %vm184 = vcmp.ne.s32.totalorder %v182, 0
    %vm185 = vcmp.ne.s32.totalorder %v183, 0
    %v186 = vsel %vm184, %v178, 0.0
    %v187 = vsel %vm185, %v179, 0.0
    %v188 = vpack.c.bf16 %v186, %v186
    %v189 = vpack.c.bf16 %v187, %v187
    %v190 = vpack.c.bf16 %v98, %v98
    %v191 = vpack.c.bf16 %v144, %v144
    %193 = vrot.lane.b32.xlu0 %v190, 120
    %v194 = vpop.permute.xlu0 %193
    %v196 = vsel %vm151, %v188, 0
    %vm198 = vcmask 1043456
    %v200 = vsel %vm198, %v194, 0
    %202 = vmatprep.subr.bf16.mxu0 0
    %203 = vmatpush1.bf16.msra.mxu0 %v200
    %204 = vmatprep.subr.bf16.mxu0 0
    %205 = vmatpush1.bf16.msra.mxu0 0
    %206 = vmatprep.subr.bf16.mxu0 0
    %207 = vmatpush1.bf16.msra.mxu0 0
    %208 = vmatprep.subr.bf16.mxu0 0
    %209 = vmatpush1.bf16.msra.mxu0 0
    %210 = vmatprep.subr.bf16.mxu0 0
    %211 = vmatpush1.bf16.msra.mxu0 0
    %212 = vmatprep.subr.bf16.mxu0 0
    %213 = vmatpush1.bf16.msra.mxu0 0
    %214 = vmatprep.subr.bf16.mxu0 0
    %215 = vmatpush1.bf16.msra.mxu0 0
    %216 = vmatprep.subr.bf16.mxu0 0
    %217 = vmatpush1.bf16.msra.mxu0 0
    %218 = vmatprep.subr.bf16.mxu0 0
    %219 = vmatpush1.bf16.msra.mxu0 0
    %220 = vmatprep.subr.bf16.mxu0 0
    %221 = vmatpush1.bf16.msra.mxu0 0
    %222 = vmatprep.subr.bf16.mxu0 0
    %223 = vmatpush1.bf16.msra.mxu0 0
    %224 = vmatprep.subr.bf16.mxu0 0
    %225 = vmatpush1.bf16.msra.mxu0 0
    %226 = vmatprep.subr.bf16.mxu0 0
    %227 = vmatpush1.bf16.msra.mxu0 0
    %228 = vmatprep.subr.bf16.mxu0 0
    %229 = vmatpush1.bf16.msra.mxu0 0
    %230 = vmatprep.subr.bf16.mxu0 0
    %231 = vmatpush1.bf16.msra.mxu0 0
    %232 = vmatprep.subr.bf16.mxu0 0
    %233 = vmatpush1.bf16.msra.mxu0 0
    %234 = vmatprep.mubr.bf16.mxu0 0
    %235 = vmatmul.mubr.bf16.gmra.mrb[0].mxu0 %v196
    %v236 = vpop.f32.mrb[0].mxu0
    %v237 = vadd.f32 0.0, %v236
    %v238 = vpop.f32.mrb[0].mxu0
    %v239 = vpop.f32.mrb[0].mxu0
    %v240 = vpop.f32.mrb[0].mxu0
    %241 = vdwg.mxu0
    %243 = vrot.lane.b32.xlu0 %v191, 120
    %v244 = vpop.permute.xlu0 %243
    %v246 = vsel %vm151, %v189, 0
    %v249 = vsel %vm198, %v244, 0
    %251 = vmatprep.subr.bf16.mxu0 0
    %252 = vmatpush1.bf16.msra.mxu0 %v249
    %253 = vmatprep.subr.bf16.mxu0 0
    %254 = vmatpush1.bf16.msra.mxu0 0
    %255 = vmatprep.subr.bf16.mxu0 0
    %256 = vmatpush1.bf16.msra.mxu0 0
    %257 = vmatprep.subr.bf16.mxu0 0
    %258 = vmatpush1.bf16.msra.mxu0 0
    %259 = vmatprep.subr.bf16.mxu0 0
    %260 = vmatpush1.bf16.msra.mxu0 0
    %261 = vmatprep.subr.bf16.mxu0 0
    %262 = vmatpush1.bf16.msra.mxu0 0
    %263 = vmatprep.subr.bf16.mxu0 0
    %264 = vmatpush1.bf16.msra.mxu0 0
    %265 = vmatprep.subr.bf16.mxu0 0
    %266 = vmatpush1.bf16.msra.mxu0 0
    %267 = vmatprep.subr.bf16.mxu0 0
    %268 = vmatpush1.bf16.msra.mxu0 0
    %269 = vmatprep.subr.bf16.mxu0 0
    %270 = vmatpush1.bf16.msra.mxu0 0
    %271 = vmatprep.subr.bf16.mxu0 0
    %272 = vmatpush1.bf16.msra.mxu0 0
    %273 = vmatprep.subr.bf16.mxu0 0
    %274 = vmatpush1.bf16.msra.mxu0 0
    %275 = vmatprep.subr.bf16.mxu0 0
    %276 = vmatpush1.bf16.msra.mxu0 0
    %277 = vmatprep.subr.bf16.mxu0 0
    %278 = vmatpush1.bf16.msra.mxu0 0
    %279 = vmatprep.subr.bf16.mxu0 0
    %280 = vmatpush1.bf16.msra.mxu0 0
    %281 = vmatprep.subr.bf16.mxu0 0
    %282 = vmatpush1.bf16.msra.mxu0 0
    %283 = vmatprep.mubr.bf16.mxu0 0
    %284 = vmatmul.mubr.bf16.gmra.mrb[0].mxu0 %v246
    %v285 = vpop.f32.mrb[0].mxu0
    %v286 = vadd.f32 0.0, %v285
    %v287 = vpop.f32.mrb[0].mxu0
    %v288 = vpop.f32.mrb[0].mxu0
    %v289 = vpop.f32.mrb[0].mxu0
    %290 = vdwg.mxu0
    %291 = vst.msk [vmem:[#allocation7] sm:$0xff] %vm151, %v237
    %292 = vst.msk [vmem:[#allocation7 + $0x8] sm:$0xff] %vm151, %v286
    // Predicated region
    $region22: #{tpu_custom_call.1} parent=1 // pred_check
      _
    $region23: #{tpu_custom_call.1} parent=1 // pred_check_branch
      %294 = sbr.rel (0) target = $region25
    $region24: #{tpu_custom_call.1} parent=1 // pred_region
      %s296 = ssub.s32 256, 256
      %297 = vsyncadd [#allocation4], %s296
      %s298 = sshll.u32 [#allocation7], 4
      %s299 = int_to_ptr.vmem [resolvable:$true] %s298
      %304 = dma.vmem_to_hbm [thread:$0]  %s299, 256, %s3, [#allocation4], 128, 128, 8
    $region25: #{tpu_custom_call.1} parent=1 // pred_fallthru
      _
    // Predicated region
    $region26: #{tpu_custom_call.1} parent=1 // pred_check
      _
    $region27: #{tpu_custom_call.1} parent=1 // pred_check_branch
      %306 = sbr.rel (0) target = $region29
    $region28: #{tpu_custom_call.1} parent=1 // pred_region
      %307 = dma.done [#allocation4], 256
    $region29: #{tpu_custom_call.1} parent=1 // pred_fallthru
      _
    %308 = vsyncpa [#allocation3], 1
    %309 = vsyncpa [#allocation6], 1
    %310 = vsyncpa [#allocation4], 1

</llo_original>
